<compile_context>
chip_gen: v7x
topology: tpu7x:2x2x1
jax: 0.10.0
libtpu: 0.0.40
codegen_flags: <defaults>
</compile_context>

<pallas_src>
import functools

import jax
import jax.numpy as jnp
from jax.experimental import pallas as pl
from jax.experimental.pallas import tpu as pltpu

IN_FEATURES = 21 * 79   # 1659
H1 = 256
H2 = 64
SMALL_B = 128           # grid-less single-invocation path at/below this batch
ROW_ALIGN = 32          # batch-tile alignment (safe sublane multiple for f32/bf16/int8)


def _actor_kernel(x_ref, w1_ref, b1_ref, w2_ref, b2_ref, o_ref):
    # x: [TB, 1659] (any input dtype); w1: [1659, 256] bf16; b1: [1, 256] f32;
    # w2: [256, 64] f32; b2: [1, 64] f32; out: [TB, 64] f32.
    x = x_ref[...].astype(jnp.bfloat16)                        # in-kernel narrow cast
    h1 = jnp.dot(x, w1_ref[...], preferred_element_type=jnp.float32)   # MXU bf16
    h1 = jnp.tanh(h1 + b1_ref[...])                            # f32 VPU + EUP
    h2 = jnp.dot(h1, w2_ref[...], preferred_element_type=jnp.float32)  # tiny f32 matmul
    o_ref[...] = jnp.tanh(h2 + b2_ref[...])


def prepare_params(w1, b1, w2, b2):
    """One-time parameter prep (outside the per-step forward).

    Accepts PyTorch nn.Linear layout: w1 [256, 1659], b1 [256],
    w2 [64, 256], b2 [64]. Returns kernel layout:
    W1 [in, out] bf16, b1 [1, out] f32, W2 [in, out] f32, b2 [1, out] f32.
    """
    w1 = jnp.asarray(w1)
    w2 = jnp.asarray(w2)
    assert w1.shape == (H1, IN_FEATURES), "expected PyTorch [out, in] layout for l1"
    assert w2.shape == (H2, H1), "expected PyTorch [out, in] layout for l2"
    return (w1.T.astype(jnp.bfloat16),
            jnp.asarray(b1).reshape(1, H1).astype(jnp.float32),
            w2.T.astype(jnp.float32),
            jnp.asarray(b2).reshape(1, H2).astype(jnp.float32))


@functools.cache
def _hw_tile_config():
    """Per-generation (max batch tile, vmem_limit_bytes)."""
    try:
        vmem = pltpu.get_tpu_info().vmem_capacity_bytes
    except Exception:
        return 512, None                    # conservative: fits every scoped default
    if vmem >= (100 << 20):                 # v5e / v6e: 128 MiB physical VMEM
        return 2048, 64 << 20
    return 1024, 40 << 20                   # v7x: 64 MiB per TensorCore


def _cost(batch, x_itemsize):
    flops = 2 * batch * (IN_FEATURES * H1 + H1 * H2)
    bytes_accessed = (batch * IN_FEATURES * x_itemsize   # x (native dtype)
                      + IN_FEATURES * H1 * 2             # W1 (bf16)
                      + H1 * H2 * 4                      # W2 (f32)
                      + (H1 + H2) * 4                    # biases
                      + batch * H2 * 4)                  # out
    return pl.CostEstimate(flops=flops,
                           transcendentals=batch * (H1 + H2),
                           bytes_accessed=bytes_accessed)


def _round_up(x, m):
    return ((x + m - 1) // m) * m


@jax.jit
def minihack_actor_forward(state, w1, b1, w2, b2):
    """state: [B, 21, 79] (f32/bf16/int, passed through un-widened);
    (w1, b1, w2, b2) from prepare_params(). Returns [B, 64] f32."""
    B = state.shape[0]
    x = state.reshape(B, IN_FEATURES)       # no dtype widening: x bytes are the roofline

    if B <= SMALL_B:
        # Tiny / per-env-step batch: whole problem fits in VMEM; grid-less call.
        return pl.pallas_call(
            _actor_kernel,
            out_shape=jax.ShapeDtypeStruct((B, H2), jnp.float32),
            cost_estimate=_cost(B, x.dtype.itemsize),
        )(x, w1, b1, w2, b2)

    tb_max, vmem_limit = _hw_tile_config()
    # >= 2 grid steps so megacore / both v7x TCs engage and the x DMA pipelines
    # behind the W1 matmul; ragged last block handled by Pallas (OOB rows are
    # computed but never stored), so no padded copy of x is materialized.
    tb = min(tb_max, _round_up(pl.cdiv(B, 2), ROW_ALIGN))
    grid = (pl.cdiv(B, tb),)

    cp_kwargs = dict(dimension_semantics=("parallel",))
    if vmem_limit is not None:
        cp_kwargs["vmem_limit_bytes"] = vmem_limit

    return pl.pallas_call(
        _actor_kernel,
        out_shape=jax.ShapeDtypeStruct((B, H2), jnp.float32),
        grid=grid,
        in_specs=[
            pl.BlockSpec((tb, IN_FEATURES), lambda i: (i, 0)),
            pl.BlockSpec((IN_FEATURES, H1), lambda i: (0, 0)),   # VMEM-resident weights
            pl.BlockSpec((1, H1), lambda i: (0, 0)),
            pl.BlockSpec((H1, H2), lambda i: (0, 0)),
            pl.BlockSpec((1, H2), lambda i: (0, 0)),
        ],
        out_specs=pl.BlockSpec((tb, H2), lambda i: (i, 0)),
        compiler_params=pltpu.CompilerParams(**cp_kwargs),
        cost_estimate=_cost(B, x.dtype.itemsize),
    )(x, w1, b1, w2, b2)


def _init_params(key):
    """PyTorch nn.Linear layout ([out, in]) and init (U(+/- 1/sqrt(fan_in)))."""
    k1, k2, k3, k4 = jax.random.split(key, 4)
    bound1 = 1.0 / jnp.sqrt(IN_FEATURES)
    bound2 = 1.0 / jnp.sqrt(H1)
    w1 = jax.random.uniform(k1, (H1, IN_FEATURES), jnp.float32, -bound1, bound1)
    b1 = jax.random.uniform(k2, (H1,), jnp.float32, -bound1, bound1)
    w2 = jax.random.uniform(k3, (H2, H1), jnp.float32, -bound2, bound2)
    b2 = jax.random.uniform(k4, (H2,), jnp.float32, -bound2, bound2)
    return w1, b1, w2, b2


if __name__ == "__main__":
    key = jax.random.PRNGKey(0)
    k_params, k_state, k_state2 = jax.random.split(key, 3)

    w1, b1, w2, b2 = _init_params(k_params)        # PyTorch [out, in] layout
    params = prepare_params(w1, b1, w2, b2)        # one-time prep, outside forward

    def reference(state):                          # pure-JAX f32 reference
        xr = state.reshape(state.shape[0], -1).astype(jnp.float32)
        return jnp.tanh(jnp.tanh(xr @ w1.T + b1) @ w2.T + b2)

    # Small batch: exercises the grid-less path.
    B = 2
    state = jax.random.normal(k_state, (B, 21, 79), jnp.float32)
    out = jax.block_until_ready(minihack_actor_forward(state, *params))
    assert out.shape == (B, H2)
    # bf16 W1 -> loosened tolerance vs. the f32 reference.
    assert jnp.max(jnp.abs(out - reference(state))) < 2.5e-2

    # Larger, non-tile-divisible batch: exercises the tiled "parallel" path
    # with a ragged last block (no padded copy of x).
    B2 = 520
    state2 = jax.random.normal(k_state2, (B2, 21, 79), jnp.float32)
    out2 = jax.block_until_ready(minihack_actor_forward(state2, *params))
    assert out2.shape == (B2, H2)
    assert jnp.max(jnp.abs(out2 - reference(state2))) < 2.5e-2

    print("KERNEL_OK")
</pallas_src>

<mosaic_0001>
module attributes {stable_mosaic.version = 11 : i64} {
  func.func @_actor_kernel(%arg0: memref<2x1659xf32, #tpu.memory_space<vmem>>, %arg1: memref<1659x256xbf16, #tpu.memory_space<vmem>>, %arg2: memref<1x256xf32, #tpu.memory_space<vmem>>, %arg3: memref<256x64xf32, #tpu.memory_space<vmem>>, %arg4: memref<1x64xf32, #tpu.memory_space<vmem>>, %arg5: memref<2x64xf32, #tpu.memory_space<vmem>>) attributes {dimension_semantics = [], scalar_prefetch = 0 : i64, scratch_operands = 0 : i64, tpu.core_type = #tpu.core_type<tc>} {
    %c0 = arith.constant 0 : index
    %c0_0 = arith.constant 0 : index
    %0 = vector.load %arg0[%c0, %c0_0] : memref<2x1659xf32, #tpu.memory_space<vmem>>, vector<2x1659xf32>
    %1 = arith.truncf %0 : vector<2x1659xf32> to vector<2x1659xbf16>
    %c0_1 = arith.constant 0 : index
    %c0_2 = arith.constant 0 : index
    %2 = vector.load %arg1[%c0_1, %c0_2] : memref<1659x256xbf16, #tpu.memory_space<vmem>>, vector<1659x256xbf16>
    %cst = arith.constant dense<0.000000e+00> : vector<2x256xf32>
    %3 = tpu.matmul %1, %2, %cst {dimension_numbers = #tpu.dot_dimension_numbers<[1], [0], [0], [1], [0, 0, 1, 1], [], []>} : vector<2x1659xbf16>, vector<1659x256xbf16>, vector<2x256xf32> -> vector<2x256xf32>
    %c0_3 = arith.constant 0 : index
    %c0_4 = arith.constant 0 : index
    %4 = vector.load %arg2[%c0_3, %c0_4] : memref<1x256xf32, #tpu.memory_space<vmem>>, vector<1x256xf32>
    %5 = vector.broadcast %4 : vector<1x256xf32> to vector<2x256xf32>
    %6 = arith.addf %3, %5 : vector<2x256xf32>
    %7 = math.tanh %6 : vector<2x256xf32>
    %c0_5 = arith.constant 0 : index
    %c0_6 = arith.constant 0 : index
    %8 = vector.load %arg3[%c0_5, %c0_6] : memref<256x64xf32, #tpu.memory_space<vmem>>, vector<256x64xf32>
    %cst_7 = arith.constant dense<0.000000e+00> : vector<2x64xf32>
    %9 = tpu.matmul %7, %8, %cst_7 {dimension_numbers = #tpu.dot_dimension_numbers<[1], [0], [0], [1], [0, 0, 1, 1], [], []>} : vector<2x256xf32>, vector<256x64xf32>, vector<2x64xf32> -> vector<2x64xf32>
    %c0_8 = arith.constant 0 : index
    %c0_9 = arith.constant 0 : index
    %10 = vector.load %arg4[%c0_8, %c0_9] : memref<1x64xf32, #tpu.memory_space<vmem>>, vector<1x64xf32>
    %11 = vector.broadcast %10 : vector<1x64xf32> to vector<2x64xf32>
    %12 = arith.addf %9, %11 : vector<2x64xf32>
    %13 = math.tanh %12 : vector<2x64xf32>
    %c0_10 = arith.constant 0 : index
    %c0_11 = arith.constant 0 : index
    %14 = vector.load %arg5[%c0_10, %c0_11] : memref<2x64xf32, #tpu.memory_space<vmem>>, vector<2x64xf32>
    tpu.vector_store %arg5[%c0_10, %c0_11], %13 {strides = array<i32>} : memref<2x64xf32, #tpu.memory_space<vmem>>, vector<2x64xf32>,
    return
  }
}

</mosaic_0001>

<llo_original>
// kernel: minihack_actor_forward.1
$region0: #{minihack_actor_forward.1}
  #allocation0 [shape = 'u32[]', space=smem, size = 0x4, offset = 0x4, fixed_abs, tag = 'smem constant byte address 0x4 - core index']
  #allocation1 [shape = 'u32[144,128]{1,0:T(1,128)}', space=vmem, size = 0x12000, scoped, tag = 'internal scratch']
  %s0 = inlined_call_operand.vmem [shape: f32[2,1659], index: 0, kind: input, shape index: {}]
  %s1 = inlined_call_operand.hbm [shape: bf16[1659,256], index: 1, kind: input, shape index: {}]
  %s2 = inlined_call_operand.vmem [shape: f32[1,256], index: 2, kind: input, shape index: {}]
  %s3 = inlined_call_operand.vmem [shape: f32[256,64], index: 3, kind: input, shape index: {}]
  %s4 = inlined_call_operand.vmem [shape: f32[1,64], index: 4, kind: input, shape index: {}]
  %s5 = inlined_call_operand.hbm [shape: f32[2,64], index: 5, kind: output, shape index: {}]
  %s6 = sld [smem:[#allocation0]]
  $region34: #{minihack_actor_forward.1} parent=0
    _
  %s8 = ssub.s32 1, %s6
  %s9 = scalar_select 0, %s8, %s6
  $region1: #{minihack_actor_forward.1} parent=0
    #allocation2 [shape = 'u8[851968]{0}', space=vmem, size = 0xd0000, scoped, tag = 'input window, operand 1, single buffered']
    #allocation3 [shape = 's32[1]{0}', space=sflag, size = 0x4, scoped, tag = 'scoped memory for minihack_actor_forward.1']
    #allocation4 [shape = 's32[1]{0}', space=sflag, size = 0x4, scoped, tag = 'scoped memory for minihack_actor_forward.1']
    #allocation5 [shape = 'u8[1024]{0}', space=vmem, size = 0x400, scoped, tag = 'output window, operand 0, single buffered']
    %10 = vsyncpa [#allocation3], 0
    %11 = vsyncpa [#allocation4], 0
    // Predicated region
    $region2: #{minihack_actor_forward.1} parent=1 // pred_check
      _
    $region3: #{minihack_actor_forward.1} parent=1 // pred_check_branch
      %13 = sbr.rel (0) target = $region5
    $region4: #{minihack_actor_forward.1} parent=1 // pred_region
      _
    $region5: #{minihack_actor_forward.1} parent=1 // pred_fallthru
      _
    // Predicated region
    $region6: #{minihack_actor_forward.1} parent=1 // pred_check
      _
    $region7: #{minihack_actor_forward.1} parent=1 // pred_check_branch
      %15 = sbr.rel (0) target = $region9
    $region8: #{minihack_actor_forward.1} parent=1 // pred_region
      %s17 = ssub.s32 26624, 26624
      %18 = vsyncadd [#allocation3], %s17
      %s19 = sshll.u32 [#allocation2], 4
      %s20 = int_to_ptr.vmem [resolvable:$true] %s19
      %25 = dma.hbm_to_vmem [thread:$0]  %s1, 26624, %s20, [#allocation3], 128, 128, 8
    $region9: #{minihack_actor_forward.1} parent=1 // pred_fallthru
      _
    // Predicated region
    $region10: #{minihack_actor_forward.1} parent=1 // pred_check
      _
    $region11: #{minihack_actor_forward.1} parent=1 // pred_check_branch
      %27 = sbr.rel (0) target = $region13
    $region12: #{minihack_actor_forward.1} parent=1 // pred_region
      _
    $region13: #{minihack_actor_forward.1} parent=1 // pred_fallthru
      _
    // Predicated region
    $region14: #{minihack_actor_forward.1} parent=1 // pred_check
      _
    $region15: #{minihack_actor_forward.1} parent=1 // pred_check_branch
      %29 = sbr.rel (0) target = $region17
    $region16: #{minihack_actor_forward.1} parent=1 // pred_region
      _
    $region17: #{minihack_actor_forward.1} parent=1 // pred_fallthru
      _
    // Predicated region
    $region18: #{minihack_actor_forward.1} parent=1 // pred_check
      _
    $region19: #{minihack_actor_forward.1} parent=1 // pred_check_branch
      %31 = sbr.rel (0) target = $region21
    $region20: #{minihack_actor_forward.1} parent=1 // pred_region
      _
    $region21: #{minihack_actor_forward.1} parent=1 // pred_fallthru
      _
    // Predicated region
    $region22: #{minihack_actor_forward.1} parent=1 // pred_check
      _
    $region23: #{minihack_actor_forward.1} parent=1 // pred_check_branch
      %33 = sbr.rel (0) target = $region25
    $region24: #{minihack_actor_forward.1} parent=1 // pred_region
      %34 = dma.done [#allocation3], 26624
    $region25: #{minihack_actor_forward.1} parent=1 // pred_fallthru
      _
    %v36 = vld [vmem:[%s0] sm:$0xff]
    %v37 = vld [vmem:[%s0 + $0x8] sm:$0xff]
    %v38 = vld [vmem:[%s0 + $0x10] sm:$0xff]
    %v39 = vld [vmem:[%s0 + $0x18] sm:$0x3]
    %v44 = vcombine.high %v36, %v36
    %v46 = vunpack.c.l.s4 1983009808
    %v47 = vunpack.c.0.s8 %v46
    %v48 = vlaneseq
    %v49 = vshrl.u32 %v48, 7
    %v50 = vsub.s32 %v47, %v49
    %v51 = vrot.slane %v36, %v50
    %v53 = vunpack.c.l.s4 1983009808
    %v54 = vunpack.c.0.s8 %v53
    %v55 = vlaneseq
    %v56 = vshrl.u32 %v55, 7
    %v57 = vsub.s32 %v54, %v56
    %v58 = vrot.slane %v44, %v57
    %v59 = vcombine.high %v51, %v51
    %v60 = vcombine.high %v58, %v58
    %v61 = vcombine.high %v37, %v37
    %v63 = vunpack.c.l.s4 1983009808
    %v64 = vunpack.c.0.s8 %v63
    %v65 = vlaneseq
    %v66 = vshrl.u32 %v65, 7
    %v67 = vsub.s32 %v64, %v66
    %v68 = vrot.slane %v37, %v67
    %v70 = vunpack.c.l.s4 1983009808
    %v71 = vunpack.c.0.s8 %v70
    %v72 = vlaneseq
    %v73 = vshrl.u32 %v72, 7
    %v74 = vsub.s32 %v71, %v73
    %v75 = vrot.slane %v61, %v74
    %v76 = vcombine.high %v68, %v68
    %v77 = vcombine.high %v75, %v75
    %v78 = vcombine.high %v38, %v38
    %v80 = vunpack.c.l.s4 1983009808
    %v81 = vunpack.c.0.s8 %v80
    %v82 = vlaneseq
    %v83 = vshrl.u32 %v82, 7
    %v84 = vsub.s32 %v81, %v83
    %v85 = vrot.slane %v38, %v84
    %v87 = vunpack.c.l.s4 1983009808
    %v88 = vunpack.c.0.s8 %v87
    %v89 = vlaneseq
    %v90 = vshrl.u32 %v89, 7
    %v91 = vsub.s32 %v88, %v90
    %v92 = vrot.slane %v78, %v91
    %v93 = vcombine.high %v85, %v85
    %v94 = vcombine.high %v92, %v92
    %v96 = vunpack.c.l.s4 1983009808
    %v97 = vunpack.c.0.s8 %v96
    %v98 = vlaneseq
    %v99 = vshrl.u32 %v98, 7
    %v100 = vsub.s32 %v97, %v99
    %v101 = vrot.slane %v39, %v100
    %v115 = vpack.c.bf16 %v51, %v51
    %v116 = vpack.c.bf16 %v59, %v59
    %v117 = vpack.c.bf16 %v58, %v58
    %v118 = vpack.c.bf16 %v60, %v60
    %v119 = vpack.c.bf16 %v68, %v68
    %v120 = vpack.c.bf16 %v76, %v76
    %v121 = vpack.c.bf16 %v75, %v75
    %v122 = vpack.c.bf16 %v77, %v77
    %v123 = vpack.c.bf16 %v85, %v85
    %v124 = vpack.c.bf16 %v93, %v93
    %v125 = vpack.c.bf16 %v92, %v92
    %v126 = vpack.c.bf16 %v94, %v94
    %v127 = vpack.c.bf16 %v101, %v101
    %v128 = vld [vmem:[#allocation2] sm:$0xff]
    %v129 = vld [vmem:[#allocation2 + $0x8] sm:$0xff]
    %v130 = vld [vmem:[#allocation2 + $0x10] sm:$0xff]
    %v131 = vld [vmem:[#allocation2 + $0x18] sm:$0xff]
    %v132 = vld [vmem:[#allocation2 + $0x20] sm:$0xff]
    %v133 = vld [vmem:[#allocation2 + $0x28] sm:$0xff]
    %v134 = vld [vmem:[#allocation2 + $0x30] sm:$0xff]
    %v135 = vld [vmem:[#allocation2 + $0x38] sm:$0xff]
    %v136 = vld [vmem:[#allocation2 + $0x40] sm:$0xff]
    %v137 = vld [vmem:[#allocation2 + $0x48] sm:$0xff]
    %v138 = vld [vmem:[#allocation2 + $0x50] sm:$0xff]
    %v139 = vld [vmem:[#allocation2 + $0x58] sm:$0xff]
    %v140 = vld [vmem:[#allocation2 + $0x60] sm:$0xff]
    %v141 = vld [vmem:[#allocation2 + $0x68] sm:$0xff]
    %v142 = vld [vmem:[#allocation2 + $0x70] sm:$0xff]
    %v143 = vld [vmem:[#allocation2 + $0x78] sm:$0xff]
    %v144 = vld [vmem:[#allocation2 + $0x80] sm:$0xff]
    %v145 = vld [vmem:[#allocation2 + $0x88] sm:$0xff]
    %v146 = vld [vmem:[#allocation2 + $0x90] sm:$0xff]
    %v147 = vld [vmem:[#allocation2 + $0x98] sm:$0xff]
    %v148 = vld [vmem:[#allocation2 + $0xa0] sm:$0xff]
    %v149 = vld [vmem:[#allocation2 + $0xa8] sm:$0xff]
    %v150 = vld [vmem:[#allocation2 + $0xb0] sm:$0xff]
    %v151 = vld [vmem:[#allocation2 + $0xb8] sm:$0xff]
    %v152 = vld [vmem:[#allocation2 + $0xc0] sm:$0xff]
    %v153 = vld [vmem:[#allocation2 + $0xc8] sm:$0xff]
    %v154 = vld [vmem:[#allocation2 + $0xd0] sm:$0xff]
    %v155 = vld [vmem:[#allocation2 + $0xd8] sm:$0xff]
    %v156 = vld [vmem:[#allocation2 + $0xe0] sm:$0xff]
    %v157 = vld [vmem:[#allocation2 + $0xe8] sm:$0xff]
    %v158 = vld [vmem:[#allocation2 + $0xf0] sm:$0xff]
    %v159 = vld [vmem:[#allocation2 + $0xf8] sm:$0xff]
    %v160 = vld [vmem:[#allocation2 + $0x100] sm:$0xff]
    %v161 = vld [vmem:[#allocation2 + $0x108] sm:$0xff]
    %v162 = vld [vmem:[#allocation2 + $0x110] sm:$0xff]
    %v163 = vld [vmem:[#allocation2 + $0x118] sm:$0xff]
    %v164 = vld [vmem:[#allocation2 + $0x120] sm:$0xff]
    %v165 = vld [vmem:[#allocation2 + $0x128] sm:$0xff]
    %v166 = vld [vmem:[#allocation2 + $0x130] sm:$0xff]
    %v167 = vld [vmem:[#allocation2 + $0x138] sm:$0xff]
    %v168 = vld [vmem:[#allocation2 + $0x140] sm:$0xff]
    %v169 = vld [vmem:[#allocation2 + $0x148] sm:$0xff]
    %v170 = vld [vmem:[#allocation2 + $0x150] sm:$0xff]
    %v171 = vld [vmem:[#allocation2 + $0x158] sm:$0xff]
    %v172 = vld [vmem:[#allocation2 + $0x160] sm:$0xff]
    %v173 = vld [vmem:[#allocation2 + $0x168] sm:$0xff]
    %v174 = vld [vmem:[#allocation2 + $0x170] sm:$0xff]
    %v175 = vld [vmem:[#allocation2 + $0x178] sm:$0xff]
    %v176 = vld [vmem:[#allocation2 + $0x180] sm:$0xff]
    %v177 = vld [vmem:[#allocation2 + $0x188] sm:$0xff]
    %v178 = vld [vmem:[#allocation2 + $0x190] sm:$0xff]
    %v179 = vld [vmem:[#allocation2 + $0x198] sm:$0xff]
    %v180 = vld [vmem:[#allocation2 + $0x1a0] sm:$0xff]
    %v181 = vld [vmem:[#allocation2 + $0x1a8] sm:$0xff]
    %v182 = vld [vmem:[#allocation2 + $0x1b0] sm:$0xff]
    %v183 = vld [vmem:[#allocation2 + $0x1b8] sm:$0xff]
    %v184 = vld [vmem:[#allocation2 + $0x1c0] sm:$0xff]
    %v185 = vld [vmem:[#allocation2 + $0x1c8] sm:$0xff]
    %v186 = vld [vmem:[#allocation2 + $0x1d0] sm:$0xff]
    %v187 = vld [vmem:[#allocation2 + $0x1d8] sm:$0xff]
    %v188 = vld [vmem:[#allocation2 + $0x1e0] sm:$0xff]
    %v189 = vld [vmem:[#allocation2 + $0x1e8] sm:$0xff]
    %v190 = vld [vmem:[#allocation2 + $0x1f0] sm:$0xff]
    %v191 = vld [vmem:[#allocation2 + $0x1f8] sm:$0xff]
    %v192 = vld [vmem:[#allocation2 + $0x200] sm:$0xff]
    %v193 = vld [vmem:[#allocation2 + $0x208] sm:$0xff]
    %v194 = vld [vmem:[#allocation2 + $0x210] sm:$0xff]
    %v195 = vld [vmem:[#allocation2 + $0x218] sm:$0xff]
    %v196 = vld [vmem:[#allocation2 + $0x220] sm:$0xff]
    %v197 = vld [vmem:[#allocation2 + $0x228] sm:$0xff]
    %v198 = vld [vmem:[#allocation2 + $0x230] sm:$0xff]
    %v199 = vld [vmem:[#allocation2 + $0x238] sm:$0xff]
    %v200 = vld [vmem:[#allocation2 + $0x240] sm:$0xff]
    %v201 = vld [vmem:[#allocation2 + $0x248] sm:$0xff]
    %v202 = vld [vmem:[#allocation2 + $0x250] sm:$0xff]
    %v203 = vld [vmem:[#allocation2 + $0x258] sm:$0xff]
    %v204 = vld [vmem:[#allocation2 + $0x260] sm:$0xff]
    %v205 = vld [vmem:[#allocation2 + $0x268] sm:$0xff]
    %v206 = vld [vmem:[#allocation2 + $0x270] sm:$0xff]
    %v207 = vld [vmem:[#allocation2 + $0x278] sm:$0xff]
    %v208 = vld [vmem:[#allocation2 + $0x280] sm:$0xff]
    %v209 = vld [vmem:[#allocation2 + $0x288] sm:$0xff]
    %v210 = vld [vmem:[#allocation2 + $0x290] sm:$0xff]
    %v211 = vld [vmem:[#allocation2 + $0x298] sm:$0xff]
    %v212 = vld [vmem:[#allocation2 + $0x2a0] sm:$0xff]
    %v213 = vld [vmem:[#allocation2 + $0x2a8] sm:$0xff]
    %v214 = vld [vmem:[#allocation2 + $0x2b0] sm:$0xff]
    %v215 = vld [vmem:[#allocation2 + $0x2b8] sm:$0xff]
    %v216 = vld [vmem:[#allocation2 + $0x2c0] sm:$0xff]
    %v217 = vld [vmem:[#allocation2 + $0x2c8] sm:$0xff]
    %v218 = vld [vmem:[#allocation2 + $0x2d0] sm:$0xff]
    %v219 = vld [vmem:[#allocation2 + $0x2d8] sm:$0xff]
    %v220 = vld [vmem:[#allocation2 + $0x2e0] sm:$0xff]
    %v221 = vld [vmem:[#allocation2 + $0x2e8] sm:$0xff]
    %v222 = vld [vmem:[#allocation2 + $0x2f0] sm:$0xff]
    %v223 = vld [vmem:[#allocation2 + $0x2f8] sm:$0xff]
    %v224 = vld [vmem:[#allocation2 + $0x300] sm:$0xff]
    %v225 = vld [vmem:[#allocation2 + $0x308] sm:$0xff]
    %v226 = vld [vmem:[#allocation2 + $0x310] sm:$0xff]
    %v227 = vld [vmem:[#allocation2 + $0x318] sm:$0xff]
    %v228 = vld [vmem:[#allocation2 + $0x320] sm:$0xff]
    %v229 = vld [vmem:[#allocation2 + $0x328] sm:$0xff]
    %v230 = vld [vmem:[#allocation2 + $0x330] sm:$0xff]
    %v231 = vld [vmem:[#allocation2 + $0x338] sm:$0xff]
    %v232 = vld [vmem:[#allocation2 + $0x340] sm:$0xff]
    %v233 = vld [vmem:[#allocation2 + $0x348] sm:$0xff]
    %v234 = vld [vmem:[#allocation2 + $0x350] sm:$0xff]
    %v235 = vld [vmem:[#allocation2 + $0x358] sm:$0xff]
    %v236 = vld [vmem:[#allocation2 + $0x360] sm:$0xff]
    %v237 = vld [vmem:[#allocation2 + $0x368] sm:$0xff]
    %v238 = vld [vmem:[#allocation2 + $0x370] sm:$0xff]
    %v239 = vld [vmem:[#allocation2 + $0x378] sm:$0xff]
    %v240 = vld [vmem:[#allocation2 + $0x380] sm:$0xff]
    %v241 = vld [vmem:[#allocation2 + $0x388] sm:$0xff]
    %v242 = vld [vmem:[#allocation2 + $0x390] sm:$0xff]
    %v243 = vld [vmem:[#allocation2 + $0x398] sm:$0xff]
    %v244 = vld [vmem:[#allocation2 + $0x3a0] sm:$0xff]
    %v245 = vld [vmem:[#allocation2 + $0x3a8] sm:$0xff]
    %v246 = vld [vmem:[#allocation2 + $0x3b0] sm:$0xff]
    %v247 = vld [vmem:[#allocation2 + $0x3b8] sm:$0xff]
    %v248 = vld [vmem:[#allocation2 + $0x3c0] sm:$0xff]
    %v249 = vld [vmem:[#allocation2 + $0x3c8] sm:$0xff]
    %v250 = vld [vmem:[#allocation2 + $0x3d0] sm:$0xff]
    %v251 = vld [vmem:[#allocation2 + $0x3d8] sm:$0xff]
    %v252 = vld [vmem:[#allocation2 + $0x3e0] sm:$0xff]
    %v253 = vld [vmem:[#allocation2 + $0x3e8] sm:$0xff]
    %v254 = vld [vmem:[#allocation2 + $0x3f0] sm:$0xff]
    %v255 = vld [vmem:[#allocation2 + $0x3f8] sm:$0xff]
    %v256 = vld [vmem:[#allocation2 + $0x400] sm:$0xff]
    %v257 = vld [vmem:[#allocation2 + $0x408] sm:$0xff]
    %v258 = vld [vmem:[#allocation2 + $0x410] sm:$0xff]
    %v259 = vld [vmem:[#allocation2 + $0x418] sm:$0xff]
    %v260 = vld [vmem:[#allocation2 + $0x420] sm:$0xff]
    %v261 = vld [vmem:[#allocation2 + $0x428] sm:$0xff]
    %v262 = vld [vmem:[#allocation2 + $0x430] sm:$0xff]
    %v263 = vld [vmem:[#allocation2 + $0x438] sm:$0xff]
    %v264 = vld [vmem:[#allocation2 + $0x440] sm:$0xff]
    %v265 = vld [vmem:[#allocation2 + $0x448] sm:$0xff]
    %v266 = vld [vmem:[#allocation2 + $0x450] sm:$0xff]
    %v267 = vld [vmem:[#allocation2 + $0x458] sm:$0xff]
    %v268 = vld [vmem:[#allocation2 + $0x460] sm:$0xff]
    %v269 = vld [vmem:[#allocation2 + $0x468] sm:$0xff]
    %v270 = vld [vmem:[#allocation2 + $0x470] sm:$0xff]
    %v271 = vld [vmem:[#allocation2 + $0x478] sm:$0xff]
    %v272 = vld [vmem:[#allocation2 + $0x480] sm:$0xff]
    %v273 = vld [vmem:[#allocation2 + $0x488] sm:$0xff]
    %v274 = vld [vmem:[#allocation2 + $0x490] sm:$0xff]
    %v275 = vld [vmem:[#allocation2 + $0x498] sm:$0xff]
    %v276 = vld [vmem:[#allocation2 + $0x4a0] sm:$0xff]
    %v277 = vld [vmem:[#allocation2 + $0x4a8] sm:$0xff]
    %v278 = vld [vmem:[#allocation2 + $0x4b0] sm:$0xff]
    %v279 = vld [vmem:[#allocation2 + $0x4b8] sm:$0xff]
    %v280 = vld [vmem:[#allocation2 + $0x4c0] sm:$0xff]
    %v281 = vld [vmem:[#allocation2 + $0x4c8] sm:$0xff]
    %v282 = vld [vmem:[#allocation2 + $0x4d0] sm:$0xff]
    %v283 = vld [vmem:[#allocation2 + $0x4d8] sm:$0xff]
    %v284 = vld [vmem:[#allocation2 + $0x4e0] sm:$0xff]
    %v285 = vld [vmem:[#allocation2 + $0x4e8] sm:$0xff]
    %v286 = vld [vmem:[#allocation2 + $0x4f0] sm:$0xff]
    %v287 = vld [vmem:[#allocation2 + $0x4f8] sm:$0xff]
    %v288 = vld [vmem:[#allocation2 + $0x500] sm:$0xff]
    %v289 = vld [vmem:[#allocation2 + $0x508] sm:$0xff]
    %v290 = vld [vmem:[#allocation2 + $0x510] sm:$0xff]
    %v291 = vld [vmem:[#allocation2 + $0x518] sm:$0xff]
    %v292 = vld [vmem:[#allocation2 + $0x520] sm:$0xff]
    %v293 = vld [vmem:[#allocation2 + $0x528] sm:$0xff]
    %v294 = vld [vmem:[#allocation2 + $0x530] sm:$0xff]
    %v295 = vld [vmem:[#allocation2 + $0x538] sm:$0xff]
    %v296 = vld [vmem:[#allocation2 + $0x540] sm:$0xff]
    %v297 = vld [vmem:[#allocation2 + $0x548] sm:$0xff]
    %v298 = vld [vmem:[#allocation2 + $0x550] sm:$0xff]
    %v299 = vld [vmem:[#allocation2 + $0x558] sm:$0xff]
    %v300 = vld [vmem:[#allocation2 + $0x560] sm:$0xff]
    %v301 = vld [vmem:[#allocation2 + $0x568] sm:$0xff]
    %v302 = vld [vmem:[#allocation2 + $0x570] sm:$0xff]
    %v303 = vld [vmem:[#allocation2 + $0x578] sm:$0xff]
    %v304 = vld [vmem:[#allocation2 + $0x580] sm:$0xff]
    %v305 = vld [vmem:[#allocation2 + $0x588] sm:$0xff]
    %v306 = vld [vmem:[#allocation2 + $0x590] sm:$0xff]
    %v307 = vld [vmem:[#allocation2 + $0x598] sm:$0xff]
    %v308 = vld [vmem:[#allocation2 + $0x5a0] sm:$0xff]
    %v309 = vld [vmem:[#allocation2 + $0x5a8] sm:$0xff]
    %v310 = vld [vmem:[#allocation2 + $0x5b0] sm:$0xff]
    %v311 = vld [vmem:[#allocation2 + $0x5b8] sm:$0xff]
    %v312 = vld [vmem:[#allocation2 + $0x5c0] sm:$0xff]
    %v313 = vld [vmem:[#allocation2 + $0x5c8] sm:$0xff]
    %v314 = vld [vmem:[#allocation2 + $0x5d0] sm:$0xff]
    %v315 = vld [vmem:[#allocation2 + $0x5d8] sm:$0xff]
    %v316 = vld [vmem:[#allocation2 + $0x5e0] sm:$0xff]
    %v317 = vld [vmem:[#allocation2 + $0x5e8] sm:$0xff]
    %v318 = vld [vmem:[#allocation2 + $0x5f0] sm:$0xff]
    %v319 = vld [vmem:[#allocation2 + $0x5f8] sm:$0xff]
    %v320 = vld [vmem:[#allocation2 + $0x600] sm:$0xff]
    %v321 = vld [vmem:[#allocation2 + $0x608] sm:$0xff]
    %v322 = vld [vmem:[#allocation2 + $0x610] sm:$0xff]
    %v323 = vld [vmem:[#allocation2 + $0x618] sm:$0xff]
    %v324 = vld [vmem:[#allocation2 + $0x620] sm:$0xff]
    %v325 = vld [vmem:[#allocation2 + $0x628] sm:$0xff]
    %v326 = vld [vmem:[#allocation2 + $0x630] sm:$0xff]
    %v327 = vld [vmem:[#allocation2 + $0x638] sm:$0xff]
    %v328 = vld [vmem:[#allocation2 + $0x640] sm:$0xff]
    %v329 = vld [vmem:[#allocation2 + $0x648] sm:$0xff]
    %v330 = vld [vmem:[#allocation2 + $0x650] sm:$0xff]
    %v331 = vld [vmem:[#allocation2 + $0x658] sm:$0xff]
    %v332 = vld [vmem:[#allocation2 + $0x660] sm:$0xff]
    %v333 = vld [vmem:[#allocation2 + $0x668] sm:$0xff]
    %v334 = vld [vmem:[#allocation2 + $0x670] sm:$0xff]
    %v335 = vld [vmem:[#allocation2 + $0x678] sm:$0x33]
    %v336 = vld [vmem:[%s2] sm:$0x3]
    %v338 = vlaneseq
    %v339 = vshrl.u32 %v338, 7
    %v340 = vsub.s32 0, %v339
    %v341 = vrot.slane %v336, %v340
    %v342 = vlaneseq
    %v343 = vshrl.u32 %v342, 7
    %v344 = vsub.s32 1, %v343
    %v345 = vrot.slane %v336, %v344
    %v556 = vunpack.c.l.b16 %v128
    %v557 = vunpack.c.h.b16 %v128
    %v558 = vunpack.c.l.b16 %v129
    %v559 = vunpack.c.h.b16 %v129
    %v560 = vunpack.c.l.b16 %v130
    %v561 = vunpack.c.h.b16 %v130
    %v562 = vunpack.c.l.b16 %v131
    %v563 = vunpack.c.h.b16 %v131
    %v564 = vunpack.c.l.b16 %v132
    %v565 = vunpack.c.h.b16 %v132
    %v566 = vunpack.c.l.b16 %v133
    %v567 = vunpack.c.h.b16 %v133
    %v568 = vunpack.c.l.b16 %v134
    %v569 = vunpack.c.h.b16 %v134
    %v570 = vunpack.c.l.b16 %v135
    %v571 = vunpack.c.h.b16 %v135
    %v572 = vunpack.c.l.b16 %v136
    %v573 = vunpack.c.h.b16 %v136
    %v574 = vunpack.c.l.b16 %v137
    %v575 = vunpack.c.h.b16 %v137
    %v576 = vunpack.c.l.b16 %v138
    %v577 = vunpack.c.h.b16 %v138
    %v578 = vunpack.c.l.b16 %v139
    %v579 = vunpack.c.h.b16 %v139
    %v580 = vunpack.c.l.b16 %v140
    %v581 = vunpack.c.h.b16 %v140
    %v582 = vunpack.c.l.b16 %v141
    %v583 = vunpack.c.h.b16 %v141
    %v584 = vunpack.c.l.b16 %v142
    %v585 = vunpack.c.h.b16 %v142
    %v586 = vunpack.c.l.b16 %v143
    %v587 = vunpack.c.h.b16 %v143
    %v588 = vunpack.c.l.b16 %v144
    %v589 = vunpack.c.h.b16 %v144
    %v590 = vunpack.c.l.b16 %v145
    %v591 = vunpack.c.h.b16 %v145
    %v592 = vunpack.c.l.b16 %v146
    %v593 = vunpack.c.h.b16 %v146
    %v594 = vunpack.c.l.b16 %v147
    %v595 = vunpack.c.h.b16 %v147
    %v596 = vunpack.c.l.b16 %v148
    %v597 = vunpack.c.h.b16 %v148
    %v598 = vunpack.c.l.b16 %v149
    %v599 = vunpack.c.h.b16 %v149
    %v600 = vunpack.c.l.b16 %v150
    %v601 = vunpack.c.h.b16 %v150
    %v602 = vunpack.c.l.b16 %v151
    %v603 = vunpack.c.h.b16 %v151
    %v604 = vunpack.c.l.b16 %v152
    %v605 = vunpack.c.h.b16 %v152
    %v606 = vunpack.c.l.b16 %v153
    %v607 = vunpack.c.h.b16 %v153
    %v608 = vunpack.c.l.b16 %v154
    %v609 = vunpack.c.h.b16 %v154
    %v610 = vunpack.c.l.b16 %v155
    %v611 = vunpack.c.h.b16 %v155
    %v612 = vunpack.c.l.b16 %v156
    %v613 = vunpack.c.h.b16 %v156
    %v614 = vunpack.c.l.b16 %v157
    %v615 = vunpack.c.h.b16 %v157
    %v616 = vunpack.c.l.b16 %v158
    %v617 = vunpack.c.h.b16 %v158
    %v618 = vunpack.c.l.b16 %v159
    %v619 = vunpack.c.h.b16 %v159
    %v620 = vunpack.c.l.b16 %v160
    %v621 = vunpack.c.h.b16 %v160
    %v622 = vunpack.c.l.b16 %v161
    %v623 = vunpack.c.h.b16 %v161
    %v624 = vunpack.c.l.b16 %v162
    %v625 = vunpack.c.h.b16 %v162
    %v626 = vunpack.c.l.b16 %v163
    %v627 = vunpack.c.h.b16 %v163
    %v628 = vunpack.c.l.b16 %v164
    %v629 = vunpack.c.h.b16 %v164
    %v630 = vunpack.c.l.b16 %v165
    %v631 = vunpack.c.h.b16 %v165
    %v632 = vunpack.c.l.b16 %v166
    %v633 = vunpack.c.h.b16 %v166
    %v634 = vunpack.c.l.b16 %v167
    %v635 = vunpack.c.h.b16 %v167
    %v636 = vunpack.c.l.b16 %v168
    %v637 = vunpack.c.h.b16 %v168
    %v638 = vunpack.c.l.b16 %v169
    %v639 = vunpack.c.h.b16 %v169
    %v640 = vunpack.c.l.b16 %v170
    %v641 = vunpack.c.h.b16 %v170
    %v642 = vunpack.c.l.b16 %v171
    %v643 = vunpack.c.h.b16 %v171
    %v644 = vunpack.c.l.b16 %v172
    %v645 = vunpack.c.h.b16 %v172
    %v646 = vunpack.c.l.b16 %v173
    %v647 = vunpack.c.h.b16 %v173
    %v648 = vunpack.c.l.b16 %v174
    %v649 = vunpack.c.h.b16 %v174
    %v650 = vunpack.c.l.b16 %v175
    %v651 = vunpack.c.h.b16 %v175
    %v652 = vunpack.c.l.b16 %v176
    %v653 = vunpack.c.h.b16 %v176
    %v654 = vunpack.c.l.b16 %v177
    %v655 = vunpack.c.h.b16 %v177
    %v656 = vunpack.c.l.b16 %v178
    %v657 = vunpack.c.h.b16 %v178
    %v658 = vunpack.c.l.b16 %v179
    %v659 = vunpack.c.h.b16 %v179
    %v660 = vunpack.c.l.b16 %v180
    %v661 = vunpack.c.h.b16 %v180
    %v662 = vunpack.c.l.b16 %v181
    %v663 = vunpack.c.h.b16 %v181
    %v664 = vunpack.c.l.b16 %v182
    %v665 = vunpack.c.h.b16 %v182
    %v666 = vunpack.c.l.b16 %v183
    %v667 = vunpack.c.h.b16 %v183
    %v668 = vunpack.c.l.b16 %v184
    %v669 = vunpack.c.h.b16 %v184
    %v670 = vunpack.c.l.b16 %v185
    %v671 = vunpack.c.h.b16 %v185
    %v672 = vunpack.c.l.b16 %v186
    %v673 = vunpack.c.h.b16 %v186
    %v674 = vunpack.c.l.b16 %v187
    %v675 = vunpack.c.h.b16 %v187
    %v676 = vunpack.c.l.b16 %v188
    %v677 = vunpack.c.h.b16 %v188
    %v678 = vunpack.c.l.b16 %v189
    %v679 = vunpack.c.h.b16 %v189
    %v680 = vunpack.c.l.b16 %v190
    %v681 = vunpack.c.h.b16 %v190
    %v682 = vunpack.c.l.b16 %v191
    %v683 = vunpack.c.h.b16 %v191
    %v684 = vunpack.c.l.b16 %v192
    %v685 = vunpack.c.h.b16 %v192
    %v686 = vunpack.c.l.b16 %v193
    %v687 = vunpack.c.h.b16 %v193
    %v688 = vunpack.c.l.b16 %v194
    %v689 = vunpack.c.h.b16 %v194
    %v690 = vunpack.c.l.b16 %v195
    %v691 = vunpack.c.h.b16 %v195
    %v692 = vunpack.c.l.b16 %v196
    %v693 = vunpack.c.h.b16 %v196
    %v694 = vunpack.c.l.b16 %v197
    %v695 = vunpack.c.h.b16 %v197
    %v696 = vunpack.c.l.b16 %v198
    %v697 = vunpack.c.h.b16 %v198
    %v698 = vunpack.c.l.b16 %v199
    %v699 = vunpack.c.h.b16 %v199
    %v700 = vunpack.c.l.b16 %v200
    %v701 = vunpack.c.h.b16 %v200
    %v702 = vunpack.c.l.b16 %v201
    %v703 = vunpack.c.h.b16 %v201
    %v704 = vunpack.c.l.b16 %v202
    %v705 = vunpack.c.h.b16 %v202
    %v706 = vunpack.c.l.b16 %v203
    %v707 = vunpack.c.h.b16 %v203
    %v708 = vunpack.c.l.b16 %v204
    %v709 = vunpack.c.h.b16 %v204
    %v710 = vunpack.c.l.b16 %v205
    %v711 = vunpack.c.h.b16 %v205
    %v712 = vunpack.c.l.b16 %v206
    %v713 = vunpack.c.h.b16 %v206
    %v714 = vunpack.c.l.b16 %v207
    %v715 = vunpack.c.h.b16 %v207
    %v716 = vunpack.c.l.b16 %v208
    %v717 = vunpack.c.h.b16 %v208
    %v718 = vunpack.c.l.b16 %v209
    %v719 = vunpack.c.h.b16 %v209
    %v720 = vunpack.c.l.b16 %v210
    %v721 = vunpack.c.h.b16 %v210
    %v722 = vunpack.c.l.b16 %v211
    %v723 = vunpack.c.h.b16 %v211
    %v724 = vunpack.c.l.b16 %v212
    %v725 = vunpack.c.h.b16 %v212
    %v726 = vunpack.c.l.b16 %v213
    %v727 = vunpack.c.h.b16 %v213
    %v728 = vunpack.c.l.b16 %v214
    %v729 = vunpack.c.h.b16 %v214
    %v730 = vunpack.c.l.b16 %v215
    %v731 = vunpack.c.h.b16 %v215
    %v732 = vunpack.c.l.b16 %v216
    %v733 = vunpack.c.h.b16 %v216
    %v734 = vunpack.c.l.b16 %v217
    %v735 = vunpack.c.h.b16 %v217
    %v736 = vunpack.c.l.b16 %v218
    %v737 = vunpack.c.h.b16 %v218
    %v738 = vunpack.c.l.b16 %v219
    %v739 = vunpack.c.h.b16 %v219
    %v740 = vunpack.c.l.b16 %v220
    %v741 = vunpack.c.h.b16 %v220
    %v742 = vunpack.c.l.b16 %v221
    %v743 = vunpack.c.h.b16 %v221
    %v744 = vunpack.c.l.b16 %v222
    %v745 = vunpack.c.h.b16 %v222
    %v746 = vunpack.c.l.b16 %v223
    %v747 = vunpack.c.h.b16 %v223
    %v748 = vunpack.c.l.b16 %v224
    %v749 = vunpack.c.h.b16 %v224
    %v750 = vunpack.c.l.b16 %v225
    %v751 = vunpack.c.h.b16 %v225
    %v752 = vunpack.c.l.b16 %v226
    %v753 = vunpack.c.h.b16 %v226
    %v754 = vunpack.c.l.b16 %v227
    %v755 = vunpack.c.h.b16 %v227
    %v756 = vunpack.c.l.b16 %v228
    %v757 = vunpack.c.h.b16 %v228
    %v758 = vunpack.c.l.b16 %v229
    %v759 = vunpack.c.h.b16 %v229
    %v760 = vunpack.c.l.b16 %v230
    %v761 = vunpack.c.h.b16 %v230
    %v762 = vunpack.c.l.b16 %v231
    %v763 = vunpack.c.h.b16 %v231
    %v764 = vunpack.c.l.b16 %v232
    %v765 = vunpack.c.h.b16 %v232
    %v766 = vunpack.c.l.b16 %v233
    %v767 = vunpack.c.h.b16 %v233
    %v768 = vunpack.c.l.b16 %v234
    %v769 = vunpack.c.h.b16 %v234
    %v770 = vunpack.c.l.b16 %v235
    %v771 = vunpack.c.h.b16 %v235
    %v772 = vunpack.c.l.b16 %v236
    %v773 = vunpack.c.h.b16 %v236
    %v774 = vunpack.c.l.b16 %v237
    %v775 = vunpack.c.h.b16 %v237
    %v776 = vunpack.c.l.b16 %v238
    %v777 = vunpack.c.h.b16 %v238
    %v778 = vunpack.c.l.b16 %v239
    %v779 = vunpack.c.h.b16 %v239
    %v780 = vunpack.c.l.b16 %v240
    %v781 = vunpack.c.h.b16 %v240
    %v782 = vunpack.c.l.b16 %v241
    %v783 = vunpack.c.h.b16 %v241
    %v784 = vunpack.c.l.b16 %v242
    %v785 = vunpack.c.h.b16 %v242
    %v786 = vunpack.c.l.b16 %v243
    %v787 = vunpack.c.h.b16 %v243
    %v788 = vunpack.c.l.b16 %v244
    %v789 = vunpack.c.h.b16 %v244
    %v790 = vunpack.c.l.b16 %v245
    %v791 = vunpack.c.h.b16 %v245
    %v792 = vunpack.c.l.b16 %v246
    %v793 = vunpack.c.h.b16 %v246
    %v794 = vunpack.c.l.b16 %v247
    %v795 = vunpack.c.h.b16 %v247
    %v796 = vunpack.c.l.b16 %v248
    %v797 = vunpack.c.h.b16 %v248
    %v798 = vunpack.c.l.b16 %v249
    %v799 = vunpack.c.h.b16 %v249
    %v800 = vunpack.c.l.b16 %v250
    %v801 = vunpack.c.h.b16 %v250
    %v802 = vunpack.c.l.b16 %v251
    %v803 = vunpack.c.h.b16 %v251
    %v804 = vunpack.c.l.b16 %v252
    %v805 = vunpack.c.h.b16 %v252
    %v806 = vunpack.c.l.b16 %v253
    %v807 = vunpack.c.h.b16 %v253
    %v808 = vunpack.c.l.b16 %v254
    %v809 = vunpack.c.h.b16 %v254
    %v810 = vunpack.c.l.b16 %v255
    %v811 = vunpack.c.h.b16 %v255
    %v812 = vunpack.c.l.b16 %v256
    %v813 = vunpack.c.h.b16 %v256
    %v814 = vunpack.c.l.b16 %v257
    %v815 = vunpack.c.h.b16 %v257
    %v816 = vunpack.c.l.b16 %v258
    %v817 = vunpack.c.h.b16 %v258
    %v818 = vunpack.c.l.b16 %v259
    %v819 = vunpack.c.h.b16 %v259
    %v820 = vunpack.c.l.b16 %v260
    %v821 = vunpack.c.h.b16 %v260
    %v822 = vunpack.c.l.b16 %v261
    %v823 = vunpack.c.h.b16 %v261
    %v824 = vunpack.c.l.b16 %v262
    %v825 = vunpack.c.h.b16 %v262
    %v826 = vunpack.c.l.b16 %v263
    %v827 = vunpack.c.h.b16 %v263
    %v828 = vunpack.c.l.b16 %v264
    %v829 = vunpack.c.h.b16 %v264
    %v830 = vunpack.c.l.b16 %v265
    %v831 = vunpack.c.h.b16 %v265
    %v832 = vunpack.c.l.b16 %v266
    %v833 = vunpack.c.h.b16 %v266
    %v834 = vunpack.c.l.b16 %v267
    %v835 = vunpack.c.h.b16 %v267
    %v836 = vunpack.c.l.b16 %v268
    %v837 = vunpack.c.h.b16 %v268
    %v838 = vunpack.c.l.b16 %v269
    %v839 = vunpack.c.h.b16 %v269
    %v840 = vunpack.c.l.b16 %v270
    %v841 = vunpack.c.h.b16 %v270
    %v842 = vunpack.c.l.b16 %v271
    %v843 = vunpack.c.h.b16 %v271
    %v844 = vunpack.c.l.b16 %v272
    %v845 = vunpack.c.h.b16 %v272
    %v846 = vunpack.c.l.b16 %v273
    %v847 = vunpack.c.h.b16 %v273
    %v848 = vunpack.c.l.b16 %v274
    %v849 = vunpack.c.h.b16 %v274
    %v850 = vunpack.c.l.b16 %v275
    %v851 = vunpack.c.h.b16 %v275
    %v852 = vunpack.c.l.b16 %v276
    %v853 = vunpack.c.h.b16 %v276
    %v854 = vunpack.c.l.b16 %v277
    %v855 = vunpack.c.h.b16 %v277
    %v856 = vunpack.c.l.b16 %v278
    %v857 = vunpack.c.h.b16 %v278
    %v858 = vunpack.c.l.b16 %v279
    %v859 = vunpack.c.h.b16 %v279
    %v860 = vunpack.c.l.b16 %v280
    %v861 = vunpack.c.h.b16 %v280
    %v862 = vunpack.c.l.b16 %v281
    %v863 = vunpack.c.h.b16 %v281
    %v864 = vunpack.c.l.b16 %v282
    %v865 = vunpack.c.h.b16 %v282
    %v866 = vunpack.c.l.b16 %v283
    %v867 = vunpack.c.h.b16 %v283
    %v868 = vunpack.c.l.b16 %v284
    %v869 = vunpack.c.h.b16 %v284
    %v870 = vunpack.c.l.b16 %v285
    %v871 = vunpack.c.h.b16 %v285
    %v872 = vunpack.c.l.b16 %v286
    %v873 = vunpack.c.h.b16 %v286
    %v874 = vunpack.c.l.b16 %v287
    %v875 = vunpack.c.h.b16 %v287
    %v876 = vunpack.c.l.b16 %v288
    %v877 = vunpack.c.h.b16 %v288
    %v878 = vunpack.c.l.b16 %v289
    %v879 = vunpack.c.h.b16 %v289
    %v880 = vunpack.c.l.b16 %v290
    %v881 = vunpack.c.h.b16 %v290
    %v882 = vunpack.c.l.b16 %v291
    %v883 = vunpack.c.h.b16 %v291
    %v884 = vunpack.c.l.b16 %v292
    %v885 = vunpack.c.h.b16 %v292
    %v886 = vunpack.c.l.b16 %v293
    %v887 = vunpack.c.h.b16 %v293
    %v888 = vunpack.c.l.b16 %v294
    %v889 = vunpack.c.h.b16 %v294
    %v890 = vunpack.c.l.b16 %v295
    %v891 = vunpack.c.h.b16 %v295
    %v892 = vunpack.c.l.b16 %v296
    %v893 = vunpack.c.h.b16 %v296
    %v894 = vunpack.c.l.b16 %v297
    %v895 = vunpack.c.h.b16 %v297
    %v896 = vunpack.c.l.b16 %v298
    %v897 = vunpack.c.h.b16 %v298
    %v898 = vunpack.c.l.b16 %v299
    %v899 = vunpack.c.h.b16 %v299
    %v900 = vunpack.c.l.b16 %v300
    %v901 = vunpack.c.h.b16 %v300
    %v902 = vunpack.c.l.b16 %v301
    %v903 = vunpack.c.h.b16 %v301
    %v904 = vunpack.c.l.b16 %v302
    %v905 = vunpack.c.h.b16 %v302
    %v906 = vunpack.c.l.b16 %v303
    %v907 = vunpack.c.h.b16 %v303
    %v908 = vunpack.c.l.b16 %v304
    %v909 = vunpack.c.h.b16 %v304
    %v910 = vunpack.c.l.b16 %v305
    %v911 = vunpack.c.h.b16 %v305
    %v912 = vunpack.c.l.b16 %v306
    %v913 = vunpack.c.h.b16 %v306
    %v914 = vunpack.c.l.b16 %v307
    %v915 = vunpack.c.h.b16 %v307
    %v916 = vunpack.c.l.b16 %v308
    %v917 = vunpack.c.h.b16 %v308
    %v918 = vunpack.c.l.b16 %v309
    %v919 = vunpack.c.h.b16 %v309
    %v920 = vunpack.c.l.b16 %v310
    %v921 = vunpack.c.h.b16 %v310
    %v922 = vunpack.c.l.b16 %v311
    %v923 = vunpack.c.h.b16 %v311
    %v924 = vunpack.c.l.b16 %v312
    %v925 = vunpack.c.h.b16 %v312
    %v926 = vunpack.c.l.b16 %v313
    %v927 = vunpack.c.h.b16 %v313
    %v928 = vunpack.c.l.b16 %v314
    %v929 = vunpack.c.h.b16 %v314
    %v930 = vunpack.c.l.b16 %v315
    %v931 = vunpack.c.h.b16 %v315
    %v932 = vunpack.c.l.b16 %v316
    %v933 = vunpack.c.h.b16 %v316
    %v934 = vunpack.c.l.b16 %v317
    %v935 = vunpack.c.h.b16 %v317
    %v936 = vunpack.c.l.b16 %v318
    %v937 = vunpack.c.h.b16 %v318
    %v938 = vunpack.c.l.b16 %v319
    %v939 = vunpack.c.h.b16 %v319
    %v940 = vunpack.c.l.b16 %v320
    %v941 = vunpack.c.h.b16 %v320
    %v942 = vunpack.c.l.b16 %v321
    %v943 = vunpack.c.h.b16 %v321
    %v944 = vunpack.c.l.b16 %v322
    %v945 = vunpack.c.h.b16 %v322
    %v946 = vunpack.c.l.b16 %v323
    %v947 = vunpack.c.h.b16 %v323
    %v948 = vunpack.c.l.b16 %v324
    %v949 = vunpack.c.h.b16 %v324
    %v950 = vunpack.c.l.b16 %v325
    %v951 = vunpack.c.h.b16 %v325
    %v952 = vunpack.c.l.b16 %v326
    %v953 = vunpack.c.h.b16 %v326
    %v954 = vunpack.c.l.b16 %v327
    %v955 = vunpack.c.h.b16 %v327
    %v956 = vunpack.c.l.b16 %v328
    %v957 = vunpack.c.h.b16 %v328
    %v958 = vunpack.c.l.b16 %v329
    %v959 = vunpack.c.h.b16 %v329
    %v960 = vunpack.c.l.b16 %v330
    %v961 = vunpack.c.h.b16 %v330
    %v962 = vunpack.c.l.b16 %v331
    %v963 = vunpack.c.h.b16 %v331
    %v964 = vunpack.c.l.b16 %v332
    %v965 = vunpack.c.h.b16 %v332
    %v966 = vunpack.c.l.b16 %v333
    %v967 = vunpack.c.h.b16 %v333
    %v968 = vunpack.c.l.b16 %v334
    %v969 = vunpack.c.h.b16 %v334
    %v970 = vunpack.c.l.b16 %v335
    %v971 = vunpack.c.h.b16 %v335
    %v972 = vpack.c.b16 %v558, %v556
    %v973 = vpack.c.b16 %v559, %v557
    %v974 = vpack.c.b16 %v562, %v560
    %v975 = vpack.c.b16 %v563, %v561
    %v976 = vpack.c.b16 %v566, %v564
    %v977 = vpack.c.b16 %v567, %v565
    %v978 = vpack.c.b16 %v570, %v568
    %v979 = vpack.c.b16 %v571, %v569
    %v980 = vpack.c.b16 %v574, %v572
    %v981 = vpack.c.b16 %v575, %v573
    %v982 = vpack.c.b16 %v578, %v576
    %v983 = vpack.c.b16 %v579, %v577
    %v984 = vpack.c.b16 %v582, %v580
    %v985 = vpack.c.b16 %v583, %v581
    %v986 = vpack.c.b16 %v586, %v584
    %v987 = vpack.c.b16 %v587, %v585
    %v988 = vpack.c.b16 %v590, %v588
    %v989 = vpack.c.b16 %v591, %v589
    %v990 = vpack.c.b16 %v594, %v592
    %v991 = vpack.c.b16 %v595, %v593
    %v992 = vpack.c.b16 %v598, %v596
    %v993 = vpack.c.b16 %v599, %v597
    %v994 = vpack.c.b16 %v602, %v600
    %v995 = vpack.c.b16 %v603, %v601
    %v996 = vpack.c.b16 %v606, %v604
    %v997 = vpack.c.b16 %v607, %v605
    %v998 = vpack.c.b16 %v610, %v608
    %v999 = vpack.c.b16 %v611, %v609
    %v1000 = vpack.c.b16 %v614, %v612
    %v1001 = vpack.c.b16 %v615, %v613
    %v1002 = vpack.c.b16 %v618, %v616
    %v1003 = vpack.c.b16 %v619, %v617
    %v1004 = vpack.c.b16 %v622, %v620
    %v1005 = vpack.c.b16 %v623, %v621
    %v1006 = vpack.c.b16 %v626, %v624
    %v1007 = vpack.c.b16 %v627, %v625
    %v1008 = vpack.c.b16 %v630, %v628
    %v1009 = vpack.c.b16 %v631, %v629
    %v1010 = vpack.c.b16 %v634, %v632
    %v1011 = vpack.c.b16 %v635, %v633
    %v1012 = vpack.c.b16 %v638, %v636
    %v1013 = vpack.c.b16 %v639, %v637
    %v1014 = vpack.c.b16 %v642, %v640
    %v1015 = vpack.c.b16 %v643, %v641
    %v1016 = vpack.c.b16 %v646, %v644
    %v1017 = vpack.c.b16 %v647, %v645
    %v1018 = vpack.c.b16 %v650, %v648
    %v1019 = vpack.c.b16 %v651, %v649
    %v1020 = vpack.c.b16 %v654, %v652
    %v1021 = vpack.c.b16 %v655, %v653
    %v1022 = vpack.c.b16 %v658, %v656
    %v1023 = vpack.c.b16 %v659, %v657
    %v1024 = vpack.c.b16 %v662, %v660
    %v1025 = vpack.c.b16 %v663, %v661
    %v1026 = vpack.c.b16 %v666, %v664
    %v1027 = vpack.c.b16 %v667, %v665
    %v1028 = vpack.c.b16 %v670, %v668
    %v1029 = vpack.c.b16 %v671, %v669
    %v1030 = vpack.c.b16 %v674, %v672
    %v1031 = vpack.c.b16 %v675, %v673
    %v1032 = vpack.c.b16 %v678, %v676
    %v1033 = vpack.c.b16 %v679, %v677
    %v1034 = vpack.c.b16 %v682, %v680
    %v1035 = vpack.c.b16 %v683, %v681
    %v1036 = vpack.c.b16 %v686, %v684
    %v1037 = vpack.c.b16 %v687, %v685
    %v1038 = vpack.c.b16 %v690, %v688
    %v1039 = vpack.c.b16 %v691, %v689
    %v1040 = vpack.c.b16 %v694, %v692
    %v1041 = vpack.c.b16 %v695, %v693
    %v1042 = vpack.c.b16 %v698, %v696
    %v1043 = vpack.c.b16 %v699, %v697
    %v1044 = vpack.c.b16 %v702, %v700
    %v1045 = vpack.c.b16 %v703, %v701
    %v1046 = vpack.c.b16 %v706, %v704
    %v1047 = vpack.c.b16 %v707, %v705
    %v1048 = vpack.c.b16 %v710, %v708
    %v1049 = vpack.c.b16 %v711, %v709
    %v1050 = vpack.c.b16 %v714, %v712
    %v1051 = vpack.c.b16 %v715, %v713
    %v1052 = vpack.c.b16 %v718, %v716
    %v1053 = vpack.c.b16 %v719, %v717
    %v1054 = vpack.c.b16 %v722, %v720
    %v1055 = vpack.c.b16 %v723, %v721
    %v1056 = vpack.c.b16 %v726, %v724
    %v1057 = vpack.c.b16 %v727, %v725
    %v1058 = vpack.c.b16 %v730, %v728
    %v1059 = vpack.c.b16 %v731, %v729
    %v1060 = vpack.c.b16 %v734, %v732
    %v1061 = vpack.c.b16 %v735, %v733
    %v1062 = vpack.c.b16 %v738, %v736
    %v1063 = vpack.c.b16 %v739, %v737
    %v1064 = vpack.c.b16 %v742, %v740
    %v1065 = vpack.c.b16 %v743, %v741
    %v1066 = vpack.c.b16 %v746, %v744
    %v1067 = vpack.c.b16 %v747, %v745
    %v1068 = vpack.c.b16 %v750, %v748
    %v1069 = vpack.c.b16 %v751, %v749
    %v1070 = vpack.c.b16 %v754, %v752
    %v1071 = vpack.c.b16 %v755, %v753
    %v1072 = vpack.c.b16 %v758, %v756
    %v1073 = vpack.c.b16 %v759, %v757
    %v1074 = vpack.c.b16 %v762, %v760
    %v1075 = vpack.c.b16 %v763, %v761
    %v1076 = vpack.c.b16 %v766, %v764
    %v1077 = vpack.c.b16 %v767, %v765
    %v1078 = vpack.c.b16 %v770, %v768
    %v1079 = vpack.c.b16 %v771, %v769
    %v1080 = vpack.c.b16 %v774, %v772
    %v1081 = vpack.c.b16 %v775, %v773
    %v1082 = vpack.c.b16 %v778, %v776
    %v1083 = vpack.c.b16 %v779, %v777
    %v1084 = vpack.c.b16 %v782, %v780
    %v1085 = vpack.c.b16 %v783, %v781
    %v1086 = vpack.c.b16 %v786, %v784
    %v1087 = vpack.c.b16 %v787, %v785
    %v1088 = vpack.c.b16 %v790, %v788
    %v1089 = vpack.c.b16 %v791, %v789
    %v1090 = vpack.c.b16 %v794, %v792
    %v1091 = vpack.c.b16 %v795, %v793
    %v1092 = vpack.c.b16 %v798, %v796
    %v1093 = vpack.c.b16 %v799, %v797
    %v1094 = vpack.c.b16 %v802, %v800
    %v1095 = vpack.c.b16 %v803, %v801
    %v1096 = vpack.c.b16 %v806, %v804
    %v1097 = vpack.c.b16 %v807, %v805
    %v1098 = vpack.c.b16 %v810, %v808
    %v1099 = vpack.c.b16 %v811, %v809
    %v1100 = vpack.c.b16 %v814, %v812
    %v1101 = vpack.c.b16 %v815, %v813
    %v1102 = vpack.c.b16 %v818, %v816
    %v1103 = vpack.c.b16 %v819, %v817
    %v1104 = vpack.c.b16 %v822, %v820
    %v1105 = vpack.c.b16 %v823, %v821
    %v1106 = vpack.c.b16 %v826, %v824
    %v1107 = vpack.c.b16 %v827, %v825
    %v1108 = vpack.c.b16 %v830, %v828
    %v1109 = vpack.c.b16 %v831, %v829
    %v1110 = vpack.c.b16 %v834, %v832
    %v1111 = vpack.c.b16 %v835, %v833
    %v1112 = vpack.c.b16 %v838, %v836
    %v1113 = vpack.c.b16 %v839, %v837
    %v1114 = vpack.c.b16 %v842, %v840
    %v1115 = vpack.c.b16 %v843, %v841
    %v1116 = vpack.c.b16 %v846, %v844
    %v1117 = vpack.c.b16 %v847, %v845
    %v1118 = vpack.c.b16 %v850, %v848
    %v1119 = vpack.c.b16 %v851, %v849
    %v1120 = vpack.c.b16 %v854, %v852
    %v1121 = vpack.c.b16 %v855, %v853
    %v1122 = vpack.c.b16 %v858, %v856
    %v1123 = vpack.c.b16 %v859, %v857
    %v1124 = vpack.c.b16 %v862, %v860
    %v1125 = vpack.c.b16 %v863, %v861
    %v1126 = vpack.c.b16 %v866, %v864
    %v1127 = vpack.c.b16 %v867, %v865
    %v1128 = vpack.c.b16 %v870, %v868
    %v1129 = vpack.c.b16 %v871, %v869
    %v1130 = vpack.c.b16 %v874, %v872
    %v1131 = vpack.c.b16 %v875, %v873
    %v1132 = vpack.c.b16 %v878, %v876
    %v1133 = vpack.c.b16 %v879, %v877
    %v1134 = vpack.c.b16 %v882, %v880
    %v1135 = vpack.c.b16 %v883, %v881
    %v1136 = vpack.c.b16 %v886, %v884
    %v1137 = vpack.c.b16 %v887, %v885
    %v1138 = vpack.c.b16 %v890, %v888
    %v1139 = vpack.c.b16 %v891, %v889
    %v1140 = vpack.c.b16 %v894, %v892
    %v1141 = vpack.c.b16 %v895, %v893
    %v1142 = vpack.c.b16 %v898, %v896
    %v1143 = vpack.c.b16 %v899, %v897
    %v1144 = vpack.c.b16 %v902, %v900
    %v1145 = vpack.c.b16 %v903, %v901
    %v1146 = vpack.c.b16 %v906, %v904
    %v1147 = vpack.c.b16 %v907, %v905
    %v1148 = vpack.c.b16 %v910, %v908
    %v1149 = vpack.c.b16 %v911, %v909
    %v1150 = vpack.c.b16 %v914, %v912
    %v1151 = vpack.c.b16 %v915, %v913
    %v1152 = vpack.c.b16 %v918, %v916
    %v1153 = vpack.c.b16 %v919, %v917
    %v1154 = vpack.c.b16 %v922, %v920
    %v1155 = vpack.c.b16 %v923, %v921
    %v1156 = vpack.c.b16 %v926, %v924
    %v1157 = vpack.c.b16 %v927, %v925
    %v1158 = vpack.c.b16 %v930, %v928
    %v1159 = vpack.c.b16 %v931, %v929
    %v1160 = vpack.c.b16 %v934, %v932
    %v1161 = vpack.c.b16 %v935, %v933
    %v1162 = vpack.c.b16 %v938, %v936
    %v1163 = vpack.c.b16 %v939, %v937
    %v1164 = vpack.c.b16 %v942, %v940
    %v1165 = vpack.c.b16 %v943, %v941
    %v1166 = vpack.c.b16 %v946, %v944
    %v1167 = vpack.c.b16 %v947, %v945
    %v1168 = vpack.c.b16 %v950, %v948
    %v1169 = vpack.c.b16 %v951, %v949
    %v1170 = vpack.c.b16 %v954, %v952
    %v1171 = vpack.c.b16 %v955, %v953
    %v1172 = vpack.c.b16 %v958, %v956
    %v1173 = vpack.c.b16 %v959, %v957
    %v1174 = vpack.c.b16 %v962, %v960
    %v1175 = vpack.c.b16 %v963, %v961
    %v1176 = vpack.c.b16 %v966, %v964
    %v1177 = vpack.c.b16 %v967, %v965
    %v1178 = vpack.c.b16 %v970, %v968
    %v1179 = vpack.c.b16 %v971, %v969
    %vm1386 = vcmask 1006592
    %v1388 = vsel %vm1386, %v127, 0
    %vm1390 = vcmask 1044480
    %vm1391 = vcmask 1045504
    %v1392 = vsel %vm1390, 4294967295, 65535
    %v1393 = vsel %vm1391, %v1392, 0
    %v1395 = vand.u32 %v1178, %v1393
    %v1398 = vand.u32 %v1179, %v1393
    %1400 = vmatprep.subr.bf16.mxu0 %v973
    %1401 = vmatpush1.bf16.msra.mxu0 %v972
    %1402 = vmatprep.subr.bf16.mxu0 %v975
    %1403 = vmatpush1.bf16.msra.mxu0 %v974
    %1404 = vmatprep.subr.bf16.mxu0 %v977
    %1405 = vmatpush1.bf16.msra.mxu0 %v976
    %1406 = vmatprep.subr.bf16.mxu0 %v979
    %1407 = vmatpush1.bf16.msra.mxu0 %v978
    %1408 = vmatprep.subr.bf16.mxu0 %v981
    %1409 = vmatpush1.bf16.msra.mxu0 %v980
    %1410 = vmatprep.subr.bf16.mxu0 %v983
    %1411 = vmatpush1.bf16.msra.mxu0 %v982
    %1412 = vmatprep.subr.bf16.mxu0 %v985
    %1413 = vmatpush1.bf16.msra.mxu0 %v984
    %1414 = vmatprep.subr.bf16.mxu0 %v987
    %1415 = vmatpush1.bf16.msra.mxu0 %v986
    %1416 = vmatprep.subr.bf16.mxu0 %v989
    %1417 = vmatpush1.bf16.msra.mxu0 %v988
    %1418 = vmatprep.subr.bf16.mxu0 %v991
    %1419 = vmatpush1.bf16.msra.mxu0 %v990
    %1420 = vmatprep.subr.bf16.mxu0 %v993
    %1421 = vmatpush1.bf16.msra.mxu0 %v992
    %1422 = vmatprep.subr.bf16.mxu0 %v995
    %1423 = vmatpush1.bf16.msra.mxu0 %v994
    %1424 = vmatprep.subr.bf16.mxu0 %v997
    %1425 = vmatpush1.bf16.msra.mxu0 %v996
    %1426 = vmatprep.subr.bf16.mxu0 %v999
    %1427 = vmatpush1.bf16.msra.mxu0 %v998
    %1428 = vmatprep.subr.bf16.mxu0 %v1001
    %1429 = vmatpush1.bf16.msra.mxu0 %v1000
    %1430 = vmatprep.subr.bf16.mxu0 %v1003
    %1431 = vmatpush1.bf16.msra.mxu0 %v1002
    %1432 = vmatprep.mubr.bf16.mxu0 %v116
    %1433 = vmatmul.mubr.bf16.gmra.mrb[0].mxu0 %v115
    %v1434 = vpop.f32.mrb[0].mxu0
    %v1435 = vadd.f32 %v341, %v1434
    %v1436 = vpop.f32.mrb[0].mxu0
    %v1437 = vadd.f32 %v345, %v1436
    %v1438 = vpop.f32.mrb[0].mxu0
    %v1439 = vpop.f32.mrb[0].mxu0
    %1440 = vdwg.mxu0
    %1441 = vmatprep.subr.bf16.mxu0 %v1005
    %1442 = vmatpush1.bf16.msra.mxu0 %v1004
    %1443 = vmatprep.subr.bf16.mxu0 %v1007
    %1444 = vmatpush1.bf16.msra.mxu0 %v1006
    %1445 = vmatprep.subr.bf16.mxu0 %v1009
    %1446 = vmatpush1.bf16.msra.mxu0 %v1008
    %1447 = vmatprep.subr.bf16.mxu0 %v1011
    %1448 = vmatpush1.bf16.msra.mxu0 %v1010
    %1449 = vmatprep.subr.bf16.mxu0 %v1013
    %1450 = vmatpush1.bf16.msra.mxu0 %v1012
    %1451 = vmatprep.subr.bf16.mxu0 %v1015
    %1452 = vmatpush1.bf16.msra.mxu0 %v1014
    %1453 = vmatprep.subr.bf16.mxu0 %v1017
    %1454 = vmatpush1.bf16.msra.mxu0 %v1016
    %1455 = vmatprep.subr.bf16.mxu0 %v1019
    %1456 = vmatpush1.bf16.msra.mxu0 %v1018
    %1457 = vmatprep.subr.bf16.mxu0 %v1021
    %1458 = vmatpush1.bf16.msra.mxu0 %v1020
    %1459 = vmatprep.subr.bf16.mxu0 %v1023
    %1460 = vmatpush1.bf16.msra.mxu0 %v1022
    %1461 = vmatprep.subr.bf16.mxu0 %v1025
    %1462 = vmatpush1.bf16.msra.mxu0 %v1024
    %1463 = vmatprep.subr.bf16.mxu0 %v1027
    %1464 = vmatpush1.bf16.msra.mxu0 %v1026
    %1465 = vmatprep.subr.bf16.mxu0 %v1029
    %1466 = vmatpush1.bf16.msra.mxu0 %v1028
    %1467 = vmatprep.subr.bf16.mxu0 %v1031
    %1468 = vmatpush1.bf16.msra.mxu0 %v1030
    %1469 = vmatprep.subr.bf16.mxu0 %v1033
    %1470 = vmatpush1.bf16.msra.mxu0 %v1032
    %1471 = vmatprep.subr.bf16.mxu0 %v1035
    %1472 = vmatpush1.bf16.msra.mxu0 %v1034
    %1473 = vmatprep.mubr.bf16.mxu0 %v118
    %1474 = vmatmul.mubr.bf16.gmra.mrb[0].mxu0 %v117
    %v1475 = vpop.f32.mrb[0].mxu0
    %v1476 = vadd.f32 %v1435, %v1475
    %v1477 = vpop.f32.mrb[0].mxu0
    %v1478 = vadd.f32 %v1437, %v1477
    %v1479 = vpop.f32.mrb[0].mxu0
    %v1480 = vpop.f32.mrb[0].mxu0
    %1481 = vdwg.mxu0
    %1482 = vmatprep.subr.bf16.mxu0 %v1037
    %1483 = vmatpush1.bf16.msra.mxu0 %v1036
    %1484 = vmatprep.subr.bf16.mxu0 %v1039
    %1485 = vmatpush1.bf16.msra.mxu0 %v1038
    %1486 = vmatprep.subr.bf16.mxu0 %v1041
    %1487 = vmatpush1.bf16.msra.mxu0 %v1040
    %1488 = vmatprep.subr.bf16.mxu0 %v1043
    %1489 = vmatpush1.bf16.msra.mxu0 %v1042
    %1490 = vmatprep.subr.bf16.mxu0 %v1045
    %1491 = vmatpush1.bf16.msra.mxu0 %v1044
    %1492 = vmatprep.subr.bf16.mxu0 %v1047
    %1493 = vmatpush1.bf16.msra.mxu0 %v1046
    %1494 = vmatprep.subr.bf16.mxu0 %v1049
    %1495 = vmatpush1.bf16.msra.mxu0 %v1048
    %1496 = vmatprep.subr.bf16.mxu0 %v1051
    %1497 = vmatpush1.bf16.msra.mxu0 %v1050
    %1498 = vmatprep.subr.bf16.mxu0 %v1053
    %1499 = vmatpush1.bf16.msra.mxu0 %v1052
    %1500 = vmatprep.subr.bf16.mxu0 %v1055
    %1501 = vmatpush1.bf16.msra.mxu0 %v1054
    %1502 = vmatprep.subr.bf16.mxu0 %v1057
    %1503 = vmatpush1.bf16.msra.mxu0 %v1056
    %1504 = vmatprep.subr.bf16.mxu0 %v1059
    %1505 = vmatpush1.bf16.msra.mxu0 %v1058
    %1506 = vmatprep.subr.bf16.mxu0 %v1061
    %1507 = vmatpush1.bf16.msra.mxu0 %v1060
    %1508 = vmatprep.subr.bf16.mxu0 %v1063
    %1509 = vmatpush1.bf16.msra.mxu0 %v1062
    %1510 = vmatprep.subr.bf16.mxu0 %v1065
    %1511 = vmatpush1.bf16.msra.mxu0 %v1064
    %1512 = vmatprep.subr.bf16.mxu0 %v1067
    %1513 = vmatpush1.bf16.msra.mxu0 %v1066
    %1514 = vmatprep.mubr.bf16.mxu0 %v120
    %1515 = vmatmul.mubr.bf16.gmra.mrb[0].mxu0 %v119
    %v1516 = vpop.f32.mrb[0].mxu0
    %v1517 = vadd.f32 %v1476, %v1516
    %v1518 = vpop.f32.mrb[0].mxu0
    %v1519 = vadd.f32 %v1478, %v1518
    %v1520 = vpop.f32.mrb[0].mxu0
    %v1521 = vpop.f32.mrb[0].mxu0
    %1522 = vdwg.mxu0
    %1523 = vmatprep.subr.bf16.mxu0 %v1069
    %1524 = vmatpush1.bf16.msra.mxu0 %v1068
    %1525 = vmatprep.subr.bf16.mxu0 %v1071
    %1526 = vmatpush1.bf16.msra.mxu0 %v1070
    %1527 = vmatprep.subr.bf16.mxu0 %v1073
    %1528 = vmatpush1.bf16.msra.mxu0 %v1072
    %1529 = vmatprep.subr.bf16.mxu0 %v1075
    %1530 = vmatpush1.bf16.msra.mxu0 %v1074
    %1531 = vmatprep.subr.bf16.mxu0 %v1077
    %1532 = vmatpush1.bf16.msra.mxu0 %v1076
    %1533 = vmatprep.subr.bf16.mxu0 %v1079
    %1534 = vmatpush1.bf16.msra.mxu0 %v1078
    %1535 = vmatprep.subr.bf16.mxu0 %v1081
    %1536 = vmatpush1.bf16.msra.mxu0 %v1080
    %1537 = vmatprep.subr.bf16.mxu0 %v1083
    %1538 = vmatpush1.bf16.msra.mxu0 %v1082
    %1539 = vmatprep.subr.bf16.mxu0 %v1085
    %1540 = vmatpush1.bf16.msra.mxu0 %v1084
    %1541 = vmatprep.subr.bf16.mxu0 %v1087
    %1542 = vmatpush1.bf16.msra.mxu0 %v1086
    %1543 = vmatprep.subr.bf16.mxu0 %v1089
    %1544 = vmatpush1.bf16.msra.mxu0 %v1088
    %1545 = vmatprep.subr.bf16.mxu0 %v1091
    %1546 = vmatpush1.bf16.msra.mxu0 %v1090
    %1547 = vmatprep.subr.bf16.mxu0 %v1093
    %1548 = vmatpush1.bf16.msra.mxu0 %v1092
    %1549 = vmatprep.subr.bf16.mxu0 %v1095
    %1550 = vmatpush1.bf16.msra.mxu0 %v1094
    %1551 = vmatprep.subr.bf16.mxu0 %v1097
    %1552 = vmatpush1.bf16.msra.mxu0 %v1096
    %1553 = vmatprep.subr.bf16.mxu0 %v1099
    %1554 = vmatpush1.bf16.msra.mxu0 %v1098
    %1555 = vmatprep.mubr.bf16.mxu0 %v122
    %1556 = vmatmul.mubr.bf16.gmra.mrb[0].mxu0 %v121
    %v1557 = vpop.f32.mrb[0].mxu0
    %v1558 = vadd.f32 %v1517, %v1557
    %v1559 = vpop.f32.mrb[0].mxu0
    %v1560 = vadd.f32 %v1519, %v1559
    %v1561 = vpop.f32.mrb[0].mxu0
    %v1562 = vpop.f32.mrb[0].mxu0
    %1563 = vdwg.mxu0
    %1564 = vmatprep.subr.bf16.mxu0 %v1101
    %1565 = vmatpush1.bf16.msra.mxu0 %v1100
    %1566 = vmatprep.subr.bf16.mxu0 %v1103
    %1567 = vmatpush1.bf16.msra.mxu0 %v1102
    %1568 = vmatprep.subr.bf16.mxu0 %v1105
    %1569 = vmatpush1.bf16.msra.mxu0 %v1104
    %1570 = vmatprep.subr.bf16.mxu0 %v1107
    %1571 = vmatpush1.bf16.msra.mxu0 %v1106
    %1572 = vmatprep.subr.bf16.mxu0 %v1109
    %1573 = vmatpush1.bf16.msra.mxu0 %v1108
    %1574 = vmatprep.subr.bf16.mxu0 %v1111
    %1575 = vmatpush1.bf16.msra.mxu0 %v1110
    %1576 = vmatprep.subr.bf16.mxu0 %v1113
    %1577 = vmatpush1.bf16.msra.mxu0 %v1112
    %1578 = vmatprep.subr.bf16.mxu0 %v1115
    %1579 = vmatpush1.bf16.msra.mxu0 %v1114
    %1580 = vmatprep.subr.bf16.mxu0 %v1117
    %1581 = vmatpush1.bf16.msra.mxu0 %v1116
    %1582 = vmatprep.subr.bf16.mxu0 %v1119
    %1583 = vmatpush1.bf16.msra.mxu0 %v1118
    %1584 = vmatprep.subr.bf16.mxu0 %v1121
    %1585 = vmatpush1.bf16.msra.mxu0 %v1120
    %1586 = vmatprep.subr.bf16.mxu0 %v1123
    %1587 = vmatpush1.bf16.msra.mxu0 %v1122
    %1588 = vmatprep.subr.bf16.mxu0 %v1125
    %1589 = vmatpush1.bf16.msra.mxu0 %v1124
    %1590 = vmatprep.subr.bf16.mxu0 %v1127
    %1591 = vmatpush1.bf16.msra.mxu0 %v1126
    %1592 = vmatprep.subr.bf16.mxu0 %v1129
    %1593 = vmatpush1.bf16.msra.mxu0 %v1128
    %1594 = vmatprep.subr.bf16.mxu0 %v1131
    %1595 = vmatpush1.bf16.msra.mxu0 %v1130
    %1596 = vmatprep.mubr.bf16.mxu0 %v124
    %1597 = vmatmul.mubr.bf16.gmra.mrb[0].mxu0 %v123
    %v1598 = vpop.f32.mrb[0].mxu0
    %v1599 = vadd.f32 %v1558, %v1598
    %v1600 = vpop.f32.mrb[0].mxu0
    %v1601 = vadd.f32 %v1560, %v1600
    %v1602 = vpop.f32.mrb[0].mxu0
    %v1603 = vpop.f32.mrb[0].mxu0
    %1604 = vdwg.mxu0
    %1605 = vmatprep.subr.bf16.mxu0 %v1133
    %1606 = vmatpush1.bf16.msra.mxu0 %v1132
    %1607 = vmatprep.subr.bf16.mxu0 %v1135
    %1608 = vmatpush1.bf16.msra.mxu0 %v1134
    %1609 = vmatprep.subr.bf16.mxu0 %v1137
    %1610 = vmatpush1.bf16.msra.mxu0 %v1136
    %1611 = vmatprep.subr.bf16.mxu0 %v1139
    %1612 = vmatpush1.bf16.msra.mxu0 %v1138
    %1613 = vmatprep.subr.bf16.mxu0 %v1141
    %1614 = vmatpush1.bf16.msra.mxu0 %v1140
    %1615 = vmatprep.subr.bf16.mxu0 %v1143
    %1616 = vmatpush1.bf16.msra.mxu0 %v1142
    %1617 = vmatprep.subr.bf16.mxu0 %v1145
    %1618 = vmatpush1.bf16.msra.mxu0 %v1144
    %1619 = vmatprep.subr.bf16.mxu0 %v1147
    %1620 = vmatpush1.bf16.msra.mxu0 %v1146
    %1621 = vmatprep.subr.bf16.mxu0 %v1149
    %1622 = vmatpush1.bf16.msra.mxu0 %v1148
    %1623 = vmatprep.subr.bf16.mxu0 %v1151
    %1624 = vmatpush1.bf16.msra.mxu0 %v1150
    %1625 = vmatprep.subr.bf16.mxu0 %v1153
    %1626 = vmatpush1.bf16.msra.mxu0 %v1152
    %1627 = vmatprep.subr.bf16.mxu0 %v1155
    %1628 = vmatpush1.bf16.msra.mxu0 %v1154
    %1629 = vmatprep.subr.bf16.mxu0 %v1157
    %1630 = vmatpush1.bf16.msra.mxu0 %v1156
    %1631 = vmatprep.subr.bf16.mxu0 %v1159
    %1632 = vmatpush1.bf16.msra.mxu0 %v1158
    %1633 = vmatprep.subr.bf16.mxu0 %v1161
    %1634 = vmatpush1.bf16.msra.mxu0 %v1160
    %1635 = vmatprep.subr.bf16.mxu0 %v1163
    %1636 = vmatpush1.bf16.msra.mxu0 %v1162
    %1637 = vmatprep.mubr.bf16.mxu0 %v126
    %1638 = vmatmul.mubr.bf16.gmra.mrb[0].mxu0 %v125
    %v1639 = vpop.f32.mrb[0].mxu0
    %v1640 = vadd.f32 %v1599, %v1639
    %v1641 = vpop.f32.mrb[0].mxu0
    %v1642 = vadd.f32 %v1601, %v1641
    %v1643 = vpop.f32.mrb[0].mxu0
    %v1644 = vpop.f32.mrb[0].mxu0
    %1645 = vdwg.mxu0
    %1646 = vmatprep.subr.bf16.mxu0 %v1165
    %1647 = vmatpush1.bf16.msra.mxu0 %v1164
    %1648 = vmatprep.subr.bf16.mxu0 %v1167
    %1649 = vmatpush1.bf16.msra.mxu0 %v1166
    %1650 = vmatprep.subr.bf16.mxu0 %v1169
    %1651 = vmatpush1.bf16.msra.mxu0 %v1168
    %1652 = vmatprep.subr.bf16.mxu0 %v1171
    %1653 = vmatpush1.bf16.msra.mxu0 %v1170
    %1654 = vmatprep.subr.bf16.mxu0 %v1173
    %1655 = vmatpush1.bf16.msra.mxu0 %v1172
    %1656 = vmatprep.subr.bf16.mxu0 %v1175
    %1657 = vmatpush1.bf16.msra.mxu0 %v1174
    %1658 = vmatprep.subr.bf16.mxu0 %v1177
    %1659 = vmatpush1.bf16.msra.mxu0 %v1176
    %1660 = vmatprep.subr.bf16.mxu0 %v1398
    %1661 = vmatpush1.bf16.msra.mxu0 %v1395
    %1662 = vmatprep.subr.bf16.mxu0 0
    %1663 = vmatpush1.bf16.msra.mxu0 0
    %1664 = vmatprep.subr.bf16.mxu0 0
    %1665 = vmatpush1.bf16.msra.mxu0 0
    %1666 = vmatprep.subr.bf16.mxu0 0
    %1667 = vmatpush1.bf16.msra.mxu0 0
    %1668 = vmatprep.subr.bf16.mxu0 0
    %1669 = vmatpush1.bf16.msra.mxu0 0
    %1670 = vmatprep.subr.bf16.mxu0 0
    %1671 = vmatpush1.bf16.msra.mxu0 0
    %1672 = vmatprep.subr.bf16.mxu0 0
    %1673 = vmatpush1.bf16.msra.mxu0 0
    %1674 = vmatprep.subr.bf16.mxu0 0
    %1675 = vmatpush1.bf16.msra.mxu0 0
    %1676 = vmatprep.subr.bf16.mxu0 0
    %1677 = vmatpush1.bf16.msra.mxu0 0
    %1678 = vmatprep.mubr.bf16.mxu0 0
    %1679 = vmatmul.mubr.bf16.gmra.mrb[0].mxu0 %v1388
    %v1680 = vpop.f32.mrb[0].mxu0
    %v1681 = vadd.f32 %v1640, %v1680
    %v1682 = vpop.f32.mrb[0].mxu0
    %v1683 = vadd.f32 %v1642, %v1682
    %v1684 = vpop.f32.mrb[0].mxu0
    %v1685 = vpop.f32.mrb[0].mxu0
    %1686 = vdwg.mxu0
    %v1687 = vtanh.pop %v1681
    %v1688 = vtanh.pop %v1683
    %v1689 = vld [vmem:[%s3] sm:$0xff]
    %v1690 = vld [vmem:[%s3 + $0x8] sm:$0xff]
    %v1691 = vld [vmem:[%s3 + $0x10] sm:$0xff]
    %v1692 = vld [vmem:[%s3 + $0x18] sm:$0xff]
    %v1693 = vld [vmem:[%s3 + $0x20] sm:$0xff]
    %v1694 = vld [vmem:[%s3 + $0x28] sm:$0xff]
    %v1695 = vld [vmem:[%s3 + $0x30] sm:$0xff]
    %v1696 = vld [vmem:[%s3 + $0x38] sm:$0xff]
    %v1697 = vld [vmem:[%s3 + $0x40] sm:$0xff]
    %v1698 = vld [vmem:[%s3 + $0x48] sm:$0xff]
    %v1699 = vld [vmem:[%s3 + $0x50] sm:$0xff]
    %v1700 = vld [vmem:[%s3 + $0x58] sm:$0xff]
    %v1701 = vld [vmem:[%s3 + $0x60] sm:$0xff]
    %v1702 = vld [vmem:[%s3 + $0x68] sm:$0xff]
    %v1703 = vld [vmem:[%s3 + $0x70] sm:$0xff]
    %v1704 = vld [vmem:[%s3 + $0x78] sm:$0xff]
    %v1705 = vld [vmem:[%s3 + $0x80] sm:$0xff]
    %v1706 = vld [vmem:[%s3 + $0x88] sm:$0xff]
    %v1707 = vld [vmem:[%s3 + $0x90] sm:$0xff]
    %v1708 = vld [vmem:[%s3 + $0x98] sm:$0xff]
    %v1709 = vld [vmem:[%s3 + $0xa0] sm:$0xff]
    %v1710 = vld [vmem:[%s3 + $0xa8] sm:$0xff]
    %v1711 = vld [vmem:[%s3 + $0xb0] sm:$0xff]
    %v1712 = vld [vmem:[%s3 + $0xb8] sm:$0xff]
    %v1713 = vld [vmem:[%s3 + $0xc0] sm:$0xff]
    %v1714 = vld [vmem:[%s3 + $0xc8] sm:$0xff]
    %v1715 = vld [vmem:[%s3 + $0xd0] sm:$0xff]
    %v1716 = vld [vmem:[%s3 + $0xd8] sm:$0xff]
    %v1717 = vld [vmem:[%s3 + $0xe0] sm:$0xff]
    %v1718 = vld [vmem:[%s3 + $0xe8] sm:$0xff]
    %v1719 = vld [vmem:[%s3 + $0xf0] sm:$0xff]
    %v1720 = vld [vmem:[%s3 + $0xf8] sm:$0xff]
    %v1721 = vld [vmem:[%s4] sm:$0x1]
    %v1723 = vlaneseq
    %v1724 = vshrl.u32 %v1723, 7
    %v1725 = vsub.s32 0, %v1724
    %v1726 = vrot.slane %v1721, %v1725
    %1728 = vmatprep.subr.mxu0 0.0
    %1729 = vmatpush1.msra.mxu0 %v1689
    %1730 = vmatprep.subr.mxu0 0.0
    %1731 = vmatpush1.msra.mxu0 %v1690
    %1732 = vmatprep.subr.mxu0 0.0
    %1733 = vmatpush1.msra.mxu0 %v1691
    %1734 = vmatprep.subr.mxu0 0.0
    %1735 = vmatpush1.msra.mxu0 %v1692
    %1736 = vmatprep.subr.mxu0 0.0
    %1737 = vmatpush1.msra.mxu0 %v1693
    %1738 = vmatprep.subr.mxu0 0.0
    %1739 = vmatpush1.msra.mxu0 %v1694
    %1740 = vmatprep.subr.mxu0 0.0
    %1741 = vmatpush1.msra.mxu0 %v1695
    %1742 = vmatprep.subr.mxu0 0.0
    %1743 = vmatpush1.msra.mxu0 %v1696
    %1744 = vmatprep.subr.mxu0 0.0
    %1745 = vmatpush1.msra.mxu0 %v1697
    %1746 = vmatprep.subr.mxu0 0.0
    %1747 = vmatpush1.msra.mxu0 %v1698
    %1748 = vmatprep.subr.mxu0 0.0
    %1749 = vmatpush1.msra.mxu0 %v1699
    %1750 = vmatprep.subr.mxu0 0.0
    %1751 = vmatpush1.msra.mxu0 %v1700
    %1752 = vmatprep.subr.mxu0 0.0
    %1753 = vmatpush1.msra.mxu0 %v1701
    %1754 = vmatprep.subr.mxu0 0.0
    %1755 = vmatpush1.msra.mxu0 %v1702
    %1756 = vmatprep.subr.mxu0 0.0
    %1757 = vmatpush1.msra.mxu0 %v1703
    %1758 = vmatprep.subr.mxu0 0.0
    %1759 = vmatpush1.msra.mxu0 %v1704
    %1760 = vmatprep.subr.mxu0 0.0
    %1761 = vmatpush1.msra.mxu0 %v1705
    %1762 = vmatprep.subr.mxu0 0.0
    %1763 = vmatpush1.msra.mxu0 %v1706
    %1764 = vmatprep.subr.mxu0 0.0
    %1765 = vmatpush1.msra.mxu0 %v1707
    %1766 = vmatprep.subr.mxu0 0.0
    %1767 = vmatpush1.msra.mxu0 %v1708
    %1768 = vmatprep.subr.mxu0 0.0
    %1769 = vmatpush1.msra.mxu0 %v1709
    %1770 = vmatprep.subr.mxu0 0.0
    %1771 = vmatpush1.msra.mxu0 %v1710
    %1772 = vmatprep.subr.mxu0 0.0
    %1773 = vmatpush1.msra.mxu0 %v1711
    %1774 = vmatprep.subr.mxu0 0.0
    %1775 = vmatpush1.msra.mxu0 %v1712
    %1776 = vmatprep.subr.mxu0 0.0
    %1777 = vmatpush1.msra.mxu0 %v1713
    %1778 = vmatprep.subr.mxu0 0.0
    %1779 = vmatpush1.msra.mxu0 %v1714
    %1780 = vmatprep.subr.mxu0 0.0
    %1781 = vmatpush1.msra.mxu0 %v1715
    %1782 = vmatprep.subr.mxu0 0.0
    %1783 = vmatpush1.msra.mxu0 %v1716
    %1784 = vmatprep.subr.mxu0 0.0
    %1785 = vmatpush1.msra.mxu0 %v1717
    %1786 = vmatprep.subr.mxu0 0.0
    %1787 = vmatpush1.msra.mxu0 %v1718
    %1788 = vmatprep.subr.mxu0 0.0
    %1789 = vmatpush1.msra.mxu0 %v1719
    %1790 = vmatprep.subr.mxu0 0.0
    %1791 = vmatpush1.msra.mxu0 %v1720
    %1792 = vmatprep.mubr.f32.mxu0 %v1688
    %1793 = vmatmul.mubr.f32.gmra.mrb[0].mxu0 %v1687
    %v1794 = vpop.f32.mrb[0].mxu0
    %v1795 = vadd.f32 %v1726, %v1794
    %v1796 = vpop.f32.mrb[0].mxu0
    %1797 = vdwg.mxu0
    %v1798 = vtanh.pop %v1795
    %vm1799 = vcmask 517120
    %1800 = vst.msk [vmem:[#allocation5] sm:$0x3] %vm1799, %v1798
    // Predicated region
    $region26: #{minihack_actor_forward.1} parent=1 // pred_check
      _
    $region27: #{minihack_actor_forward.1} parent=1 // pred_check_branch
      %1802 = sbr.rel (0) target = $region29
    $region28: #{minihack_actor_forward.1} parent=1 // pred_region
      %s1804 = ssub.s32 32, 32
      %1805 = vsyncadd [#allocation4], %s1804
      %s1807 = sshll.u32 [#allocation5], 4
      %s1808 = int_to_ptr.vmem [resolvable:$true] %s1807
      %1810 = dma.vmem_to_hbm [thread:$0]  %s1808, 32, %s5, [#allocation4]
    $region29: #{minihack_actor_forward.1} parent=1 // pred_fallthru
      _
    // Predicated region
    $region30: #{minihack_actor_forward.1} parent=1 // pred_check
      _
    $region31: #{minihack_actor_forward.1} parent=1 // pred_check_branch
      %1812 = sbr.rel (0) target = $region33
    $region32: #{minihack_actor_forward.1} parent=1 // pred_region
      %1813 = dma.done [#allocation4], 32
    $region33: #{minihack_actor_forward.1} parent=1 // pred_fallthru
      _
    %1814 = vsyncpa [#allocation3], 1
    %1815 = vsyncpa [#allocation4], 1

</llo_original>
